<compile_context>
chip_gen: v7x
topology: tpu7x:2x2x1
jax: 0.10.0
libtpu: 0.0.40
codegen_flags: <defaults>
</compile_context>

<pallas_src>
import jax
import jax.numpy as jnp
from jax.experimental import pallas as pl
from jax.experimental.pallas import tpu as pltpu


def _round_up(v, m):
    return (v + m - 1) // m * m


def _cdiv(a, b):
    return -(-a // b)


def _detect_multi_tensorcore():
    # v7x has 2 TensorCores per chip (sharded via "parallel" grid axes).
    # On v5e/v6e (1 TC) splitting tiles only adds grid steps + re-streams,
    # so gate the split on the device generation.
    try:
        kind = jax.devices()[0].device_kind.lower()
    except Exception:
        return False
    return "v7" in kind or "7x" in kind


_MULTI_TC = _detect_multi_tensorcore()

_TK_CAP = 2048   # K-tile cap (512x2048 f32 x-tile = 4 MiB)
_TMN_CAP = 512   # M / N tile caps


def _choose_k(ic):
    """K tiling: zero-padded to a multiple of 128, chunks of at most 2048."""
    kp128 = _round_up(ic, 128)
    nk = _cdiv(kp128, _TK_CAP)
    tk = _round_up(_cdiv(kp128, nk), 128)
    return tk, nk, nk * tk


def _choose_mn(n_rows, oc):
    """M/N tiling: blocks never exceed the array dims (no M/N padding)."""
    tm = n_rows if n_rows <= _TMN_CAP else _TMN_CAP
    tn = oc if oc <= _TMN_CAP else _TMN_CAP
    # v7x megacore: keep >= 2 blocks along a parallel axis so both TCs work.
    if _MULTI_TC and tm >= n_rows and tn >= oc:
        if oc >= 256:
            tn2 = _round_up(_cdiv(oc, 2), 128)
            if tn2 < oc:
                tn = tn2
        elif n_rows >= 64:
            tm2 = _round_up(_cdiv(n_rows, 2), 16)
            if tm2 < n_rows:
                tm = tm2
    return tm, tn


def _make_kernel(has_bias, use_scratch):
    """y[i,j] = sum_k x[i,k] @ w[k,j] (+ bias[j]).

    K is the last (arbitrary) grid axis; the accumulator (either the f32
    output block itself or a VMEM scratch) is resident across K.
    """

    def kernel(*refs):
        if has_bias:
            x_ref, w_ref, b_ref = refs[0], refs[1], refs[2]
            out_refs = refs[3:]
        else:
            x_ref, w_ref = refs[0], refs[1]
            b_ref = None
            out_refs = refs[2:]
        if use_scratch:
            o_ref, acc_ref = out_refs
        else:
            (o_ref,) = out_refs
            acc_ref = o_ref  # f32 output doubles as the K-resident accumulator

        k = pl.program_id(2)

        @pl.when(k == 0)
        def _():
            acc_ref[...] = jnp.zeros_like(acc_ref)

        # Cast the activation tile to bf16 on the VPU right before the MXU.
        acc_ref[...] += jnp.dot(
            x_ref[...].astype(jnp.bfloat16),
            w_ref[...],
            preferred_element_type=jnp.float32,
        )

        if use_scratch or has_bias:
            @pl.when(k == pl.num_programs(2) - 1)
            def _():
                res = acc_ref[...]
                if has_bias:
                    res = res + b_ref[...].astype(jnp.float32)
                o_ref[...] = res.astype(o_ref.dtype)

    return kernel


@jax.jit
def linear_forward(x, w_padded, bias2d=None):
    """y = x @ W^T + b.

    x:        [N, ic]
    w_padded: [Kp, oc] bf16 -- W^T pre-transposed / pre-cast / K-zero-padded
              once at module init (Kp = _choose_k(ic) padding).
    bias2d:   [1, oc] f32 or None
    """
    n_rows, ic = x.shape
    kp_w, oc = w_padded.shape
    tk, nk, kp = _choose_k(ic)
    assert kp == kp_w, "weight was not pre-padded for this input channel count"
    tm, tn = _choose_mn(n_rows, oc)

    out_dtype = x.dtype

    # Zero-pad activations along K only (needed for correct accumulation).
    # M / N edge blocks are handled by Pallas masking: no pads, no out slice.
    xp = x if kp == ic else jnp.pad(x, ((0, 0), (0, kp - ic)))

    grid = (_cdiv(n_rows, tm), _cdiv(oc, tn), nk)  # reduction axis last

    x_spec = pl.BlockSpec((tm, tk), lambda i, j, k: (i, k))
    w_spec = pl.BlockSpec((tk, tn), lambda i, j, k: (k, j))
    o_spec = pl.BlockSpec((tm, tn), lambda i, j, k: (i, j))

    has_bias = bias2d is not None
    use_scratch = out_dtype != jnp.float32
    scratch = [pltpu.VMEM((tm, tn), jnp.float32)] if use_scratch else []

    in_specs = [x_spec, w_spec]
    args = [xp, w_padded]
    if has_bias:
        in_specs.append(pl.BlockSpec((1, tn), lambda i, j, k: (0, j)))
        args.append(bias2d)

    cost = pl.CostEstimate(
        flops=2 * n_rows * oc * kp,
        transcendentals=0,
        bytes_accessed=(n_rows * kp * x.dtype.itemsize
                        + kp * oc * 2
                        + (oc * 4 if has_bias else 0)
                        + n_rows * oc * out_dtype.itemsize),
    )

    return pl.pallas_call(
        _make_kernel(has_bias, use_scratch),
        out_shape=jax.ShapeDtypeStruct((n_rows, oc), out_dtype),
        grid_spec=pltpu.PrefetchScalarGridSpec(
            num_scalar_prefetch=0,
            grid=grid,
            in_specs=in_specs,
            out_specs=o_spec,
            scratch_shapes=scratch,
        ),
        compiler_params=pltpu.CompilerParams(
            dimension_semantics=("parallel", "parallel", "arbitrary"),
            # ~48 MiB: headroom on v7x (64 MiB phys/TC), ample for v5e/v6e.
            # Max working set at the tile caps (incl. double buffering) ~14 MiB.
            vmem_limit_bytes=48 * 1024 * 1024,
        ),
        cost_estimate=cost,
    )(*args)


class LinearPallas:
    """Mirrors the PyTorch module: holds nn.Linear(ic, oc, bias) params and
    applies them to data['x'] (dict stands in for the PyG `Data` object)."""

    def __init__(self, ic, oc, bias=True, key=None):
        if key is None:
            key = jax.random.PRNGKey(0)
        self.ic, self.oc, self.use_bias = ic, oc, bias
        kw, kb = jax.random.split(key)
        # PyTorch nn.Linear default init: U(-1/sqrt(ic), 1/sqrt(ic)), W: [oc, ic]
        bound = 1.0 / (ic ** 0.5)
        self.weight = jax.random.uniform(
            kw, (oc, ic), jnp.float32, minval=-bound, maxval=bound)
        self.bias = (jax.random.uniform(
            kb, (oc,), jnp.float32, minval=-bound, maxval=bound)
            if bias else None)
        self.bias2d = (self.bias.reshape(1, oc).astype(jnp.float32)
                       if bias else None)
        # Weights-stationary: transpose + bf16-cast + K-zero-pad ONCE here.
        _, _, kp = _choose_k(ic)
        wt = self.weight.T.astype(jnp.bfloat16)            # [ic, oc]
        if kp != ic:
            wt = jnp.pad(wt, ((0, kp - ic), (0, 0)))        # [Kp, oc]
        self.wt_padded = wt

    def __call__(self, data):
        # TODO(synk): torch_geometric `Data` has no JAX equivalent; a plain
        # dict carries the graph fields, only `x` is transformed.
        data = dict(data)
        data["x"] = linear_forward(data["x"], self.wt_padded, self.bias2d)
        return data


if __name__ == "__main__":
    key = jax.random.PRNGKey(0)
    k_x, k_p, k_x2, k_p2 = jax.random.split(key, 4)

    # Case 1: small, unaligned shapes (only K gets padded), with bias.
    N, ic, oc = 8, 32, 64
    x = jax.random.normal(k_x, (N, ic), dtype=jnp.float32)
    mod = LinearPallas(ic, oc, bias=True, key=k_p)
    out = mod({"x": x})
    y = jax.block_until_ready(out["x"])
    y_ref = x @ mod.weight.T + mod.bias
    assert y.shape == (N, oc)
    # bf16 operands with f32 accumulation -> loose-but-tight-enough check.
    assert jnp.allclose(y, y_ref, atol=5e-2, rtol=5e-2), \
        float(jnp.max(jnp.abs(y - y_ref)))

    # Case 2: no-bias, unaligned shapes exercising K padding + masked edges.
    N2, ic2, oc2 = 40, 200, 160
    x2 = jax.random.normal(k_x2, (N2, ic2), dtype=jnp.float32)
    mod2 = LinearPallas(ic2, oc2, bias=False, key=k_p2)
    out2 = mod2({"x": x2})
    y2 = jax.block_until_ready(out2["x"])
    y2_ref = x2 @ mod2.weight.T
    assert y2.shape == (N2, oc2)
    assert jnp.allclose(y2, y2_ref, atol=5e-2, rtol=5e-2), \
        float(jnp.max(jnp.abs(y2 - y2_ref)))

    print("KERNEL_OK")
</pallas_src>

<mosaic_0001>
module attributes {stable_mosaic.version = 11 : i64} {
  func.func @kernel(%arg0: i32, %arg1: i32, %arg2: i32, %arg3: memref<8x128xf32, #tpu.memory_space<vmem>>, %arg4: memref<128x64xbf16, #tpu.memory_space<vmem>>, %arg5: memref<1x64xf32, #tpu.memory_space<vmem>>, %arg6: memref<8x64xf32, #tpu.memory_space<vmem>>) attributes {dimension_semantics = [#tpu.dimension_semantics<parallel>, #tpu.dimension_semantics<parallel>, #tpu.dimension_semantics<arbitrary>], iteration_bounds = array<i64: 1, 1, 1>, scalar_prefetch = 0 : i64, scratch_operands = 0 : i64, tpu.core_type = #tpu.core_type<tc>, window_params = [{transform_indices = @transform_0, window_bounds = array<i64: 8, 128>}, {transform_indices = @transform_1, window_bounds = array<i64: 128, 64>}, {transform_indices = @transform_2, window_bounds = array<i64: 1, 64>}, {transform_indices = @transform_3, window_bounds = array<i64: 8, 64>}]} {
    %c0_i32 = arith.constant 0 : i32
    %0 = arith.cmpi eq, %arg2, %c0_i32 : i32
    %1 = arith.extui %0 : i1 to i32
    %c0_i32_0 = arith.constant 0 : i32
    %2 = arith.cmpi ne, %1, %c0_i32_0 : i32
    scf.if %2 {
      %cst_10 = arith.constant 0.000000e+00 : f32
      %13 = vector.broadcast %cst_10 : f32 to vector<8x64xf32>
      %c0_11 = arith.constant 0 : index
      %c0_12 = arith.constant 0 : index
      %14 = vector.load %arg6[%c0_11, %c0_12] : memref<8x64xf32, #tpu.memory_space<vmem>>, vector<8x64xf32>
      tpu.vector_store %arg6[%c0_11, %c0_12], %13 {strides = array<i32>} : memref<8x64xf32, #tpu.memory_space<vmem>>, vector<8x64xf32>,
    } else {
    }
    %c0 = arith.constant 0 : index
    %c0_1 = arith.constant 0 : index
    %3 = vector.load %arg6[%c0, %c0_1] : memref<8x64xf32, #tpu.memory_space<vmem>>, vector<8x64xf32>
    %c0_2 = arith.constant 0 : index
    %c0_3 = arith.constant 0 : index
    %4 = vector.load %arg3[%c0_2, %c0_3] : memref<8x128xf32, #tpu.memory_space<vmem>>, vector<8x128xf32>
    %5 = arith.truncf %4 : vector<8x128xf32> to vector<8x128xbf16>
    %c0_4 = arith.constant 0 : index
    %c0_5 = arith.constant 0 : index
    %6 = vector.load %arg4[%c0_4, %c0_5] : memref<128x64xbf16, #tpu.memory_space<vmem>>, vector<128x64xbf16>
    %cst = arith.constant dense<0.000000e+00> : vector<8x64xf32>
    %7 = tpu.matmul %5, %6, %cst {dimension_numbers = #tpu.dot_dimension_numbers<[1], [0], [0], [1], [0, 0, 1, 1], [], []>} : vector<8x128xbf16>, vector<128x64xbf16>, vector<8x64xf32> -> vector<8x64xf32>
    %8 = arith.addf %3, %7 : vector<8x64xf32>
    %c0_6 = arith.constant 0 : index
    %c0_7 = arith.constant 0 : index
    %9 = vector.load %arg6[%c0_6, %c0_7] : memref<8x64xf32, #tpu.memory_space<vmem>>, vector<8x64xf32>
    tpu.vector_store %arg6[%c0_6, %c0_7], %8 {strides = array<i32>} : memref<8x64xf32, #tpu.memory_space<vmem>>, vector<8x64xf32>,
    %c0_i32_8 = arith.constant 0 : i32
    %10 = arith.cmpi eq, %arg2, %c0_i32_8 : i32
    %11 = arith.extui %10 : i1 to i32
    %c0_i32_9 = arith.constant 0 : i32
    %12 = arith.cmpi ne, %11, %c0_i32_9 : i32
    scf.if %12 {
      %c0_10 = arith.constant 0 : index
      %c0_11 = arith.constant 0 : index
      %13 = vector.load %arg6[%c0_10, %c0_11] : memref<8x64xf32, #tpu.memory_space<vmem>>, vector<8x64xf32>
      %c0_12 = arith.constant 0 : index
      %c0_13 = arith.constant 0 : index
      %14 = vector.load %arg5[%c0_12, %c0_13] : memref<1x64xf32, #tpu.memory_space<vmem>>, vector<1x64xf32>
      %15 = vector.broadcast %14 : vector<1x64xf32> to vector<8x64xf32>
      %16 = arith.addf %13, %15 : vector<8x64xf32>
      %c0_14 = arith.constant 0 : index
      %c0_15 = arith.constant 0 : index
      %17 = vector.load %arg6[%c0_14, %c0_15] : memref<8x64xf32, #tpu.memory_space<vmem>>, vector<8x64xf32>
      tpu.vector_store %arg6[%c0_14, %c0_15], %16 {strides = array<i32>} : memref<8x64xf32, #tpu.memory_space<vmem>>, vector<8x64xf32>,
    } else {
    }
    return
  }
  func.func @transform_0(%arg0: i32, %arg1: i32, %arg2: i32) -> (i32, i32) {
    %c0_i32 = arith.constant 0 : i32
    return %arg0, %arg2 : i32, i32
  }
  func.func @transform_1(%arg0: i32, %arg1: i32, %arg2: i32) -> (i32, i32) {
    %c0_i32 = arith.constant 0 : i32
    return %arg2, %arg1 : i32, i32
  }
  func.func @transform_2(%arg0: i32, %arg1: i32, %arg2: i32) -> (i32, i32) {
    %c0_i32 = arith.constant 0 : i32
    %c0_i32_0 = arith.constant 0 : i32
    return %c0_i32, %arg1 : i32, i32
  }
  func.func @transform_3(%arg0: i32, %arg1: i32, %arg2: i32) -> (i32, i32) {
    %c0_i32 = arith.constant 0 : i32
    return %arg0, %arg1 : i32, i32
  }
}

</mosaic_0001>

<llo_original>
// kernel: linear_forward.1
$region0: #{linear_forward.1}
  #allocation0 [shape = 'u32[]', space=smem, size = 0x4, offset = 0x4, fixed_abs, tag = 'smem constant byte address 0x4 - core index']
  #allocation1 [shape = 'u32[144,128]{1,0:T(1,128)}', space=vmem, size = 0x12000, scoped, tag = 'internal scratch']
  %s0 = inlined_call_operand.vmem [shape: f32[8,128], index: 0, kind: input, shape index: {}]
  %s1 = inlined_call_operand.vmem [shape: bf16[128,64], index: 1, kind: input, shape index: {}]
  %s2 = inlined_call_operand.vmem [shape: f32[1,64], index: 2, kind: input, shape index: {}]
  %s3 = inlined_call_operand.hbm [shape: f32[8,64], index: 3, kind: output, shape index: {}]
  %s4 = sld [smem:[#allocation0]]
  $region30: #{linear_forward.1} parent=0
    _
  %s6 = ssub.s32 1, %s4
  %s7 = scalar_select 0, %s6, %s4
  $region1: #{linear_forward.1} parent=0
    #allocation2 [shape = 'u8[4096]{0}', space=vmem, size = 0x1000, scoped, tag = 'output window, operand 0, single buffered']
    #allocation3 [shape = 's32[1]{0}', space=sflag, size = 0x4, scoped, tag = 'scoped memory for linear_forward.1']
    %8 = vsyncpa [#allocation3], 0
    // Predicated region
    $region2: #{linear_forward.1} parent=1 // pred_check
      _
    $region3: #{linear_forward.1} parent=1 // pred_check_branch
      %10 = sbr.rel (0) target = $region5
    $region4: #{linear_forward.1} parent=1 // pred_region
      _
    $region5: #{linear_forward.1} parent=1 // pred_fallthru
      _
    // Predicated region
    $region6: #{linear_forward.1} parent=1 // pred_check
      _
    $region7: #{linear_forward.1} parent=1 // pred_check_branch
      %12 = sbr.rel (0) target = $region9
    $region8: #{linear_forward.1} parent=1 // pred_region
      _
    $region9: #{linear_forward.1} parent=1 // pred_fallthru
      _
    // Predicated region
    $region10: #{linear_forward.1} parent=1 // pred_check
      _
    $region11: #{linear_forward.1} parent=1 // pred_check_branch
      %14 = sbr.rel (0) target = $region13
    $region12: #{linear_forward.1} parent=1 // pred_region
      _
    $region13: #{linear_forward.1} parent=1 // pred_fallthru
      _
    %p16 = scmp.eq.s32.totalorder 0, 0
    // Predicated region
    $region14: #{linear_forward.1} parent=1 // pred_check
      %p17 = pneg %p16
    $region15: #{linear_forward.1} parent=1 // pred_check_branch
      %19 = sbr.rel (%p17) target = $region17
    $region16: #{linear_forward.1} parent=1 // pred_region
      %vm20 = vcmask 523264
      %21 = vst.msk [vmem:[#allocation2] sm:$0xff] %vm20, 0.0
    $region17: #{linear_forward.1} parent=1 // pred_fallthru
      _
    %v22 = vld [vmem:[#allocation2] sm:$0xff]
    %v23 = vld [vmem:[%s0] sm:$0xff]
    %v24 = vpack.c.bf16 %v23, %v23
    %v25 = vld [vmem:[%s1] sm:$0xf]
    %v26 = vld [vmem:[%s1 + $0x4] sm:$0xf]
    %v27 = vld [vmem:[%s1 + $0x8] sm:$0xf]
    %v28 = vld [vmem:[%s1 + $0xc] sm:$0xf]
    %v29 = vld [vmem:[%s1 + $0x10] sm:$0xf]
    %v30 = vld [vmem:[%s1 + $0x14] sm:$0xf]
    %v31 = vld [vmem:[%s1 + $0x18] sm:$0xf]
    %v32 = vld [vmem:[%s1 + $0x1c] sm:$0xf]
    %v33 = vld [vmem:[%s1 + $0x20] sm:$0xf]
    %v34 = vld [vmem:[%s1 + $0x24] sm:$0xf]
    %v35 = vld [vmem:[%s1 + $0x28] sm:$0xf]
    %v36 = vld [vmem:[%s1 + $0x2c] sm:$0xf]
    %v37 = vld [vmem:[%s1 + $0x30] sm:$0xf]
    %v38 = vld [vmem:[%s1 + $0x34] sm:$0xf]
    %v39 = vld [vmem:[%s1 + $0x38] sm:$0xf]
    %v40 = vld [vmem:[%s1 + $0x3c] sm:$0xf]
    %v57 = vunpack.c.l.b16 %v25
    %v58 = vunpack.c.l.b16 %v26
    %v59 = vunpack.c.l.b16 %v27
    %v60 = vunpack.c.l.b16 %v28
    %v61 = vunpack.c.l.b16 %v29
    %v62 = vunpack.c.l.b16 %v30
    %v63 = vunpack.c.l.b16 %v31
    %v64 = vunpack.c.l.b16 %v32
    %v65 = vunpack.c.l.b16 %v33
    %v66 = vunpack.c.l.b16 %v34
    %v67 = vunpack.c.l.b16 %v35
    %v68 = vunpack.c.l.b16 %v36
    %v69 = vunpack.c.l.b16 %v37
    %v70 = vunpack.c.l.b16 %v38
    %v71 = vunpack.c.l.b16 %v39
    %v72 = vunpack.c.l.b16 %v40
    %v73 = vpack.c.b16 %v58, %v57
    %v74 = vpack.c.b16 %v60, %v59
    %v75 = vpack.c.b16 %v62, %v61
    %v76 = vpack.c.b16 %v64, %v63
    %v77 = vpack.c.b16 %v66, %v65
    %v78 = vpack.c.b16 %v68, %v67
    %v79 = vpack.c.b16 %v70, %v69
    %v80 = vpack.c.b16 %v72, %v71
    %89 = vmatprep.subr.bf16.mxu0 0
    %90 = vmatpush1.bf16.msra.mxu0 %v73
    %91 = vmatprep.subr.bf16.mxu0 0
    %92 = vmatpush1.bf16.msra.mxu0 %v74
    %93 = vmatprep.subr.bf16.mxu0 0
    %94 = vmatpush1.bf16.msra.mxu0 %v75
    %95 = vmatprep.subr.bf16.mxu0 0
    %96 = vmatpush1.bf16.msra.mxu0 %v76
    %97 = vmatprep.subr.bf16.mxu0 0
    %98 = vmatpush1.bf16.msra.mxu0 %v77
    %99 = vmatprep.subr.bf16.mxu0 0
    %100 = vmatpush1.bf16.msra.mxu0 %v78
    %101 = vmatprep.subr.bf16.mxu0 0
    %102 = vmatpush1.bf16.msra.mxu0 %v79
    %103 = vmatprep.subr.bf16.mxu0 0
    %104 = vmatpush1.bf16.msra.mxu0 %v80
    %105 = vmatprep.subr.bf16.mxu0 0
    %106 = vmatpush1.bf16.msra.mxu0 0
    %107 = vmatprep.subr.bf16.mxu0 0
    %108 = vmatpush1.bf16.msra.mxu0 0
    %109 = vmatprep.subr.bf16.mxu0 0
    %110 = vmatpush1.bf16.msra.mxu0 0
    %111 = vmatprep.subr.bf16.mxu0 0
    %112 = vmatpush1.bf16.msra.mxu0 0
    %113 = vmatprep.subr.bf16.mxu0 0
    %114 = vmatpush1.bf16.msra.mxu0 0
    %115 = vmatprep.subr.bf16.mxu0 0
    %116 = vmatpush1.bf16.msra.mxu0 0
    %117 = vmatprep.subr.bf16.mxu0 0
    %118 = vmatpush1.bf16.msra.mxu0 0
    %119 = vmatprep.subr.bf16.mxu0 0
    %120 = vmatpush1.bf16.msra.mxu0 0
    %121 = vmatprep.mubr.bf16.mxu0 0
    %122 = vmatmul.mubr.bf16.gmra.mrb[0].mxu0 %v24
    %v123 = vpop.f32.mrb[0].mxu0
    %v124 = vadd.f32 0.0, %v123
    %v125 = vpop.f32.mrb[0].mxu0
    %v126 = vpop.f32.mrb[0].mxu0
    %v127 = vpop.f32.mrb[0].mxu0
    %128 = vdwg.mxu0
    %v129 = vadd.f32 %v22, %v124
    %vm130 = vcmask 523264
    %131 = vst.msk [vmem:[#allocation2] sm:$0xff] %vm130, %v129
    // Predicated region
    $region18: #{linear_forward.1} parent=1 // pred_check
      %p132 = pneg %p16
    $region19: #{linear_forward.1} parent=1 // pred_check_branch
      %134 = sbr.rel (%p132) target = $region21
    $region20: #{linear_forward.1} parent=1 // pred_region
      %v135 = vld [vmem:[#allocation2] sm:$0xff]
      %v136 = vld [vmem:[%s2] sm:$0x1]
      %v138 = vlaneseq
      %v139 = vshrl.u32 %v138, 7
      %v140 = vsub.s32 0, %v139
      %v141 = vrot.slane %v136, %v140
      %v143 = vadd.f32 %v135, %v141
      %144 = vst.msk [vmem:[#allocation2] sm:$0xff] %vm130, %v143
    $region21: #{linear_forward.1} parent=1 // pred_fallthru
      _
    // Predicated region
    $region22: #{linear_forward.1} parent=1 // pred_check
      _
    $region23: #{linear_forward.1} parent=1 // pred_check_branch
      %146 = sbr.rel (0) target = $region25
    $region24: #{linear_forward.1} parent=1 // pred_region
      %s148 = ssub.s32 128, 128
      %149 = vsyncadd [#allocation3], %s148
      %s151 = sshll.u32 [#allocation2], 4
      %s152 = int_to_ptr.vmem [resolvable:$true] %s151
      %154 = dma.vmem_to_hbm [thread:$0]  %s152, 128, %s3, [#allocation3]
    $region25: #{linear_forward.1} parent=1 // pred_fallthru
      _
    // Predicated region
    $region26: #{linear_forward.1} parent=1 // pred_check
      _
    $region27: #{linear_forward.1} parent=1 // pred_check_branch
      %156 = sbr.rel (0) target = $region29
    $region28: #{linear_forward.1} parent=1 // pred_region
      %157 = dma.done [#allocation3], 128
    $region29: #{linear_forward.1} parent=1 // pred_fallthru
      _
    %158 = vsyncpa [#allocation3], 1

</llo_original>
